<compile_context>
chip_gen: v7x
topology: tpu7x:2x2x1
jax: 0.10.0
libtpu: 0.0.40
codegen_flags: <defaults>
</compile_context>

<pallas_src>
import functools

import jax
import jax.numpy as jnp
from jax.experimental import pallas as pl
from jax.experimental.pallas import tpu as pltpu


def _round_up(x, m):
    return ((x + m - 1) // m) * m


def _tpu_generation():
    """Best-effort TPU generation detection (0 = unknown)."""
    try:
        kind = jax.devices()[0].device_kind.lower()
    except Exception:
        return 0
    for gen in (7, 6, 5, 4, 3, 2):
        if f"v{gen}" in kind or f"tpu{gen}" in kind:
            return gen
    return 0


def _chip_defaults():
    """Returns (block_rows, vmem_limit_bytes, prefer_mxu_lookup)."""
    gen = _tpu_generation()
    if gen >= 7:   # v7x: 64 MiB VMEM per TensorCore, huge MXU headroom
        return 2048, 48 * 1024 * 1024, True
    if gen == 6:   # v6e: 128 MiB VMEM, 918 TF/s MXU
        return 2048, 64 * 1024 * 1024, True
    if gen == 5:   # v5e/v5p: 128 MiB VMEM, slower MXU -> keep the VPU path
        return 2048, 64 * 1024 * 1024, False
    return 1024, 32 * 1024 * 1024, False   # unknown/older: conservative


# ---------------------------------------------------------------------------
# Kernels
# ---------------------------------------------------------------------------
def _select_kernel(dist_ref, expand_ref, table_ref, out_ref, *, max_dist, vocab):
    # dist_ref  : (BR, 128)     int32   -- block of flattened distances
    # expand_ref: (128, 128*H)  bf16    -- one-hot lane-expansion E[c, c*H+h] = 1
    # table_ref : (V,   128*H)  float32 -- lane-tiled table, tab[v, c*H+h] = table[v, h]
    # out_ref   : (BR,  128*H)          -- interleaved output, out[r, c*H+h] = table[idx, h]
    idx = jnp.clip(dist_ref[...], -1, max_dist) + 1                       # (BR, 128) int32
    # Lane-expand each index H times via a one-hot matmul (exact for vocab <= 256).
    idx_exp = jnp.dot(idx.astype(expand_ref.dtype), expand_ref[...],
                      preferred_element_type=jnp.float32)                 # (BR, 128*H) f32
    # Start from a broadcast of table row 0 (padding row): one fewer wide
    # compare/select than looping from v=0, and exact for ANY table contents.
    out = jnp.broadcast_to(table_ref[pl.ds(0, 1), :], out_ref.shape).astype(jnp.float32)
    for v in range(1, vocab):                                             # static unroll
        row = table_ref[pl.ds(v, 1), :]                                   # (1, 128*H)
        out = jnp.where(idx_exp == float(v), row, out)
    out_ref[...] = out.astype(out_ref.dtype)


def _mxu_kernel(dist_ref, w_hi_ref, w_lo_ref, out_ref, *, max_dist, vocab):
    # dist_ref : (BR, 128)        int32
    # w_hi/w_lo: (128*V, 128*H)   bf16 block-diagonal table split (hi + lo ~= f32 table)
    # out_ref  : (BR, 128*H)
    idx = jnp.clip(dist_ref[...], -1, max_dist) + 1                       # (BR, 128)
    # One-hot lane-concatenated mask: m[r, v*128 + c] = (idx[r, c] == v).
    m = jnp.concatenate(
        [(idx == v).astype(jnp.bfloat16) for v in range(vocab)], axis=1)  # (BR, 128*V)
    acc = jnp.dot(m, w_hi_ref[...], preferred_element_type=jnp.float32)
    acc = acc + jnp.dot(m, w_lo_ref[...], preferred_element_type=jnp.float32)
    out_ref[...] = acc.astype(out_ref.dtype)


# ---------------------------------------------------------------------------
# Wrapper
# ---------------------------------------------------------------------------
def spatial_encoder_forward(dist, table, max_dist, *, block_rows=None,
                            lookup="auto", out_dtype=jnp.float32):
    """dist: int [...], table: float32 [max_dist+2, num_heads] -> out_dtype [..., num_heads]."""
    vocab, num_heads = table.shape
    assert vocab == max_dist + 2
    lane_out = 128 * num_heads

    default_rows, vmem_limit, prefer_mxu = _chip_defaults()
    if block_rows is None:
        block_rows = default_rows
    assert block_rows % 8 == 0, "block_rows must be a multiple of 8"

    if lookup == "auto":
        # MXU lookup on v6e/v7x (select chain is VALU-bound there); always above V~32.
        lookup = "mxu" if ((prefer_mxu and vocab > 4) or vocab > 32) else "select"
    assert lookup in ("select", "mxu")

    orig_shape = dist.shape
    flat = dist.reshape(-1).astype(jnp.int32)
    t = flat.shape[0]
    r = pl.cdiv(t, 128)

    # >= 4 grid steps for medium/large inputs (v7x megacore sharding + DMA pipelining);
    # tiny inputs fall back to a single small block.
    rows_blk = min(block_rows, max(8, _round_up(pl.cdiv(r, 4), 8)))
    grid_n = pl.cdiv(r, rows_blk)
    r_pad = grid_n * rows_blk

    pad = r_pad * 128 - t
    if pad:
        # pad value -1 -> index 0 (padding row); sliced off at the end.
        flat = jnp.pad(flat, (0, pad), constant_values=-1)
    d2 = flat.reshape(r_pad, 128)

    table = table.astype(jnp.float32)
    if lookup == "select":
        # Lane-tiled table: tab[v, c*H + h] = table[v, h].
        tab_tiled = jnp.tile(table, (1, 128))                             # (V, 128*H)
        # One-hot lane-expansion E[c, j] = 1 iff j // H == c (bf16 exact for vocab <= 256).
        exp_dtype = jnp.bfloat16 if vocab <= 256 else jnp.float32
        c_ids = jax.lax.broadcasted_iota(jnp.int32, (128, lane_out), 0)
        j_ids = jax.lax.broadcasted_iota(jnp.int32, (128, lane_out), 1)
        expand = (j_ids // num_heads == c_ids).astype(exp_dtype)          # (128, 128*H)
        kernel = functools.partial(_select_kernel, max_dist=max_dist, vocab=vocab)
        side_ops = (expand, tab_tiled)
        side_specs = [pl.BlockSpec((128, lane_out), lambda i: (0, 0)),
                      pl.BlockSpec((vocab, lane_out), lambda i: (0, 0))]
        flops = 2 * t * 128 * num_heads + 2 * t * num_heads * vocab
    else:
        lane_mask = 128 * vocab
        # Block-diagonal lookup weights: W[v*128 + c, c*H + h] = table[v, h],
        # hi/lo split into two bf16 matrices so hi + lo ~= the f32 table.
        row_i = jax.lax.broadcasted_iota(jnp.int32, (lane_mask, lane_out), 0)
        col_i = jax.lax.broadcasted_iota(jnp.int32, (lane_mask, lane_out), 1)
        w_full = jnp.where(row_i % 128 == col_i // num_heads,
                           table[row_i // 128, col_i % num_heads],
                           0.0).astype(jnp.float32)
        w_hi = w_full.astype(jnp.bfloat16)
        w_lo = (w_full - w_hi.astype(jnp.float32)).astype(jnp.bfloat16)
        kernel = functools.partial(_mxu_kernel, max_dist=max_dist, vocab=vocab)
        side_ops = (w_hi, w_lo)
        side_specs = [pl.BlockSpec((lane_mask, lane_out), lambda i: (0, 0)),
                      pl.BlockSpec((lane_mask, lane_out), lambda i: (0, 0))]
        flops = 4 * t * num_heads * 128 * vocab

    out2d = pl.pallas_call(
        kernel,
        out_shape=jax.ShapeDtypeStruct((r_pad, lane_out), out_dtype),
        grid_spec=pltpu.PrefetchScalarGridSpec(
            num_scalar_prefetch=0,
            grid=(grid_n,),
            in_specs=[pl.BlockSpec((rows_blk, 128), lambda i: (i, 0))] + side_specs,
            out_specs=pl.BlockSpec((rows_blk, lane_out), lambda i: (i, 0)),
        ),
        compiler_params=pltpu.CompilerParams(
            dimension_semantics=("parallel",),
            vmem_limit_bytes=vmem_limit,
        ),
        cost_estimate=pl.CostEstimate(
            flops=int(flops),
            transcendentals=0,
            bytes_accessed=int(4 * t + t * num_heads * jnp.dtype(out_dtype).itemsize),
        ),
    )(d2, *side_ops)

    # out2d's flat layout is already [..., num_heads]; reshape is free when no padding
    # was needed. Only off-shaped inputs pay the slice copy.
    if pad:
        out = out2d.reshape(-1)[: t * num_heads].reshape(*orig_shape, num_heads)
    else:
        out = out2d.reshape(*orig_shape, num_heads)
    return out


def make_embedding_table(key, max_dist, num_heads):
    # nn.Embedding default init: N(0, 1); padding_idx=0 row zeroed.
    table = jax.random.normal(key, (max_dist + 2, num_heads), dtype=jnp.float32)
    table = table.at[0].set(0.0)
    return table


def _reference(dist, table, max_dist):
    return jnp.take(table, jnp.clip(dist, -1, max_dist) + 1, axis=0)


if __name__ == "__main__":
    MAX_DIST = 8
    NUM_HEADS = 4

    key = jax.random.PRNGKey(0)
    k_tab, k1, k2, k3 = jax.random.split(key, 4)
    table = make_embedding_table(k_tab, MAX_DIST, NUM_HEADS)

    # Case 1: small graph batch (B=2, N=16), auto-selected lookup path, lower clamp hit.
    dist1 = jax.random.randint(k1, (2, 16, 16), -3, MAX_DIST + 4, dtype=jnp.int32)
    out1 = jax.block_until_ready(spatial_encoder_forward(dist1, table, MAX_DIST))
    ref1 = _reference(dist1, table, MAX_DIST)
    assert out1.shape == (2, 16, 16, NUM_HEADS)
    assert jnp.allclose(out1, ref1, atol=1e-4)

    # Case 2: larger batch -> multi-step grid (r=256 rows -> 4 grid steps); both paths.
    dist2 = jax.random.randint(k2, (2, 128, 128), -1, MAX_DIST + 4, dtype=jnp.int32)
    ref2 = _reference(dist2, table, MAX_DIST)
    out2a = jax.block_until_ready(
        spatial_encoder_forward(dist2, table, MAX_DIST, lookup="select"))
    assert out2a.shape == (2, 128, 128, NUM_HEADS)
    assert jnp.allclose(out2a, ref2, atol=1e-6)      # VPU select path is exact
    out2b = jax.block_until_ready(
        spatial_encoder_forward(dist2, table, MAX_DIST, lookup="mxu"))
    assert jnp.allclose(out2b, ref2, atol=1e-4)      # hi/lo bf16 split ~1e-5

    # Case 3: element count not a multiple of 128 -> pad/slice fallback.
    dist3 = jax.random.randint(k3, (1, 24, 24), -1, MAX_DIST + 4, dtype=jnp.int32)
    out3 = jax.block_until_ready(spatial_encoder_forward(dist3, table, MAX_DIST))
    assert out3.shape == (1, 24, 24, NUM_HEADS)
    assert jnp.allclose(out3, _reference(dist3, table, MAX_DIST), atol=1e-4)

    # Case 4: opt-in bfloat16 output (exact select path, cast at the final store).
    out4 = jax.block_until_ready(
        spatial_encoder_forward(dist1, table, MAX_DIST, lookup="select",
                                out_dtype=jnp.bfloat16))
    assert out4.dtype == jnp.bfloat16
    assert jnp.allclose(out4.astype(jnp.float32),
                        ref1.astype(jnp.bfloat16).astype(jnp.float32), atol=2e-2)

    print("KERNEL_OK")
</pallas_src>

<mosaic_0001>
module attributes {stable_mosaic.version = 11 : i64} {
  func.func @_select_kernel(%arg0: i32, %arg1: memref<8x128xi32, #tpu.memory_space<vmem>>, %arg2: memref<128x512xbf16, #tpu.memory_space<vmem>>, %arg3: memref<10x512xf32, #tpu.memory_space<vmem>>, %arg4: memref<8x512xf32, #tpu.memory_space<vmem>>) attributes {dimension_semantics = [#tpu.dimension_semantics<parallel>], iteration_bounds = array<i64: 1>, scalar_prefetch = 0 : i64, scratch_operands = 0 : i64, tpu.core_type = #tpu.core_type<tc>, window_params = [{transform_indices = @transform_0, window_bounds = array<i64: 8, 128>}, {pipeline_mode = #tpu.pipeline_mode<synchronous>, transform_indices = @transform_1, window_bounds = array<i64: 128, 512>}, {pipeline_mode = #tpu.pipeline_mode<synchronous>, transform_indices = @transform_2, window_bounds = array<i64: 10, 512>}, {transform_indices = @transform_3, window_bounds = array<i64: 8, 512>}]} {
    %c0 = arith.constant 0 : index
    %c0_0 = arith.constant 0 : index
    %0 = vector.load %arg1[%c0, %c0_0] : memref<8x128xi32, #tpu.memory_space<vmem>>, vector<8x128xi32>
    %c-1_i32 = arith.constant -1 : i32
    %c8_i32 = arith.constant 8 : i32
    %1 = vector.broadcast %c-1_i32 : i32 to vector<8x128xi32>
    %2 = arith.maxsi %1, %0 : vector<8x128xi32>
    %3 = vector.broadcast %c8_i32 : i32 to vector<8x128xi32>
    %4 = arith.minsi %3, %2 : vector<8x128xi32>
    %c1_i32 = arith.constant 1 : i32
    %5 = vector.broadcast %c1_i32 : i32 to vector<8x128xi32>
    %6 = arith.addi %4, %5 : vector<8x128xi32>
    %7 = arith.sitofp %6 : vector<8x128xi32> to vector<8x128xbf16>
    %c0_1 = arith.constant 0 : index
    %c0_2 = arith.constant 0 : index
    %8 = vector.load %arg2[%c0_1, %c0_2] : memref<128x512xbf16, #tpu.memory_space<vmem>>, vector<128x512xbf16>
    %cst = arith.constant dense<0.000000e+00> : vector<8x512xf32>
    %9 = tpu.matmul %7, %8, %cst {dimension_numbers = #tpu.dot_dimension_numbers<[1], [0], [0], [1], [0, 0, 1, 1], [], []>} : vector<8x128xbf16>, vector<128x512xbf16>, vector<8x512xf32> -> vector<8x512xf32>
    %c0_3 = arith.constant 0 : index
    %c0_4 = arith.constant 0 : index
    %10 = vector.load %arg3[%c0_3, %c0_4] : memref<10x512xf32, #tpu.memory_space<vmem>>, vector<1x512xf32>
    %11 = vector.shape_cast %10 : vector<1x512xf32> to vector<1x512xf32>
    %12 = vector.broadcast %11 : vector<1x512xf32> to vector<8x512xf32>
    %c1 = arith.constant 1 : index
    %c0_5 = arith.constant 0 : index
    %13 = vector.load %arg3[%c1, %c0_5] : memref<10x512xf32, #tpu.memory_space<vmem>>, vector<1x512xf32>
    %cst_6 = arith.constant 1.000000e+00 : f32
    %14 = vector.broadcast %cst_6 : f32 to vector<8x512xf32>
    %15 = arith.cmpf oeq, %9, %14 : vector<8x512xf32>
    %16 = vector.shape_cast %13 : vector<1x512xf32> to vector<1x512xf32>
    %17 = vector.broadcast %16 : vector<1x512xf32> to vector<8x512xf32>
    %18 = arith.select %15, %17, %12 : vector<8x512xi1>, vector<8x512xf32>
    %c2 = arith.constant 2 : index
    %c0_7 = arith.constant 0 : index
    %19 = vector.load %arg3[%c2, %c0_7] : memref<10x512xf32, #tpu.memory_space<vmem>>, vector<1x512xf32>
    %cst_8 = arith.constant 2.000000e+00 : f32
    %20 = vector.broadcast %cst_8 : f32 to vector<8x512xf32>
    %21 = arith.cmpf oeq, %9, %20 : vector<8x512xf32>
    %22 = vector.shape_cast %19 : vector<1x512xf32> to vector<1x512xf32>
    %23 = vector.broadcast %22 : vector<1x512xf32> to vector<8x512xf32>
    %24 = arith.select %21, %23, %18 : vector<8x512xi1>, vector<8x512xf32>
    %c3 = arith.constant 3 : index
    %c0_9 = arith.constant 0 : index
    %25 = vector.load %arg3[%c3, %c0_9] : memref<10x512xf32, #tpu.memory_space<vmem>>, vector<1x512xf32>
    %cst_10 = arith.constant 3.000000e+00 : f32
    %26 = vector.broadcast %cst_10 : f32 to vector<8x512xf32>
    %27 = arith.cmpf oeq, %9, %26 : vector<8x512xf32>
    %28 = vector.shape_cast %25 : vector<1x512xf32> to vector<1x512xf32>
    %29 = vector.broadcast %28 : vector<1x512xf32> to vector<8x512xf32>
    %30 = arith.select %27, %29, %24 : vector<8x512xi1>, vector<8x512xf32>
    %c4 = arith.constant 4 : index
    %c0_11 = arith.constant 0 : index
    %31 = vector.load %arg3[%c4, %c0_11] : memref<10x512xf32, #tpu.memory_space<vmem>>, vector<1x512xf32>
    %cst_12 = arith.constant 4.000000e+00 : f32
    %32 = vector.broadcast %cst_12 : f32 to vector<8x512xf32>
    %33 = arith.cmpf oeq, %9, %32 : vector<8x512xf32>
    %34 = vector.shape_cast %31 : vector<1x512xf32> to vector<1x512xf32>
    %35 = vector.broadcast %34 : vector<1x512xf32> to vector<8x512xf32>
    %36 = arith.select %33, %35, %30 : vector<8x512xi1>, vector<8x512xf32>
    %c5 = arith.constant 5 : index
    %c0_13 = arith.constant 0 : index
    %37 = vector.load %arg3[%c5, %c0_13] : memref<10x512xf32, #tpu.memory_space<vmem>>, vector<1x512xf32>
    %cst_14 = arith.constant 5.000000e+00 : f32
    %38 = vector.broadcast %cst_14 : f32 to vector<8x512xf32>
    %39 = arith.cmpf oeq, %9, %38 : vector<8x512xf32>
    %40 = vector.shape_cast %37 : vector<1x512xf32> to vector<1x512xf32>
    %41 = vector.broadcast %40 : vector<1x512xf32> to vector<8x512xf32>
    %42 = arith.select %39, %41, %36 : vector<8x512xi1>, vector<8x512xf32>
    %c6 = arith.constant 6 : index
    %c0_15 = arith.constant 0 : index
    %43 = vector.load %arg3[%c6, %c0_15] : memref<10x512xf32, #tpu.memory_space<vmem>>, vector<1x512xf32>
    %cst_16 = arith.constant 6.000000e+00 : f32
    %44 = vector.broadcast %cst_16 : f32 to vector<8x512xf32>
    %45 = arith.cmpf oeq, %9, %44 : vector<8x512xf32>
    %46 = vector.shape_cast %43 : vector<1x512xf32> to vector<1x512xf32>
    %47 = vector.broadcast %46 : vector<1x512xf32> to vector<8x512xf32>
    %48 = arith.select %45, %47, %42 : vector<8x512xi1>, vector<8x512xf32>
    %c7 = arith.constant 7 : index
    %c0_17 = arith.constant 0 : index
    %49 = vector.load %arg3[%c7, %c0_17] : memref<10x512xf32, #tpu.memory_space<vmem>>, vector<1x512xf32>
    %cst_18 = arith.constant 7.000000e+00 : f32
    %50 = vector.broadcast %cst_18 : f32 to vector<8x512xf32>
    %51 = arith.cmpf oeq, %9, %50 : vector<8x512xf32>
    %52 = vector.shape_cast %49 : vector<1x512xf32> to vector<1x512xf32>
    %53 = vector.broadcast %52 : vector<1x512xf32> to vector<8x512xf32>
    %54 = arith.select %51, %53, %48 : vector<8x512xi1>, vector<8x512xf32>
    %c8 = arith.constant 8 : index
    %c0_19 = arith.constant 0 : index
    %55 = vector.load %arg3[%c8, %c0_19] : memref<10x512xf32, #tpu.memory_space<vmem>>, vector<1x512xf32>
    %cst_20 = arith.constant 8.000000e+00 : f32
    %56 = vector.broadcast %cst_20 : f32 to vector<8x512xf32>
    %57 = arith.cmpf oeq, %9, %56 : vector<8x512xf32>
    %58 = vector.shape_cast %55 : vector<1x512xf32> to vector<1x512xf32>
    %59 = vector.broadcast %58 : vector<1x512xf32> to vector<8x512xf32>
    %60 = arith.select %57, %59, %54 : vector<8x512xi1>, vector<8x512xf32>
    %c9 = arith.constant 9 : index
    %c0_21 = arith.constant 0 : index
    %61 = vector.load %arg3[%c9, %c0_21] : memref<10x512xf32, #tpu.memory_space<vmem>>, vector<1x512xf32>
    %cst_22 = arith.constant 9.000000e+00 : f32
    %62 = vector.broadcast %cst_22 : f32 to vector<8x512xf32>
    %63 = arith.cmpf oeq, %9, %62 : vector<8x512xf32>
    %64 = vector.shape_cast %61 : vector<1x512xf32> to vector<1x512xf32>
    %65 = vector.broadcast %64 : vector<1x512xf32> to vector<8x512xf32>
    %66 = arith.select %63, %65, %60 : vector<8x512xi1>, vector<8x512xf32>
    %c0_23 = arith.constant 0 : index
    %c0_24 = arith.constant 0 : index
    %67 = vector.load %arg4[%c0_23, %c0_24] : memref<8x512xf32, #tpu.memory_space<vmem>>, vector<8x512xf32>
    tpu.vector_store %arg4[%c0_23, %c0_24], %66 {strides = array<i32>} : memref<8x512xf32, #tpu.memory_space<vmem>>, vector<8x512xf32>,
    return
  }
  func.func @transform_0(%arg0: i32) -> (i32, i32) {
    %c0_i32 = arith.constant 0 : i32
    %c0_i32_0 = arith.constant 0 : i32
    return %arg0, %c0_i32 : i32, i32
  }
  func.func @transform_1(%arg0: i32) -> (i32, i32) {
    %c0_i32 = arith.constant 0 : i32
    %c0_i32_0 = arith.constant 0 : i32
    %c0_i32_1 = arith.constant 0 : i32
    return %c0_i32, %c0_i32_0 : i32, i32
  }
  func.func @transform_2(%arg0: i32) -> (i32, i32) {
    %c0_i32 = arith.constant 0 : i32
    %c0_i32_0 = arith.constant 0 : i32
    %c0_i32_1 = arith.constant 0 : i32
    return %c0_i32, %c0_i32_0 : i32, i32
  }
  func.func @transform_3(%arg0: i32) -> (i32, i32) {
    %c0_i32 = arith.constant 0 : i32
    %c0_i32_0 = arith.constant 0 : i32
    return %arg0, %c0_i32 : i32, i32
  }
}

</mosaic_0001>

<llo_original>
// kernel: tpu_custom_call.1
$region0: #{tpu_custom_call.1}
  #allocation0 [shape = 'u32[]', space=smem, size = 0x4, offset = 0x4, fixed_abs, tag = 'smem constant byte address 0x4 - core index']
  #allocation1 [shape = 'u32[144,128]{1,0:T(1,128)}', space=vmem, size = 0x12000, scoped, tag = 'internal scratch']
  %s0 = inlined_call_operand.hbm [shape: s32[8,128], index: 0, kind: input, shape index: {}]
  %s1 = inlined_call_operand.hbm [shape: bf16[128,512], index: 1, kind: input, shape index: {}]
  %s2 = inlined_call_operand.hbm [shape: f32[10,512], index: 2, kind: input, shape index: {}]
  %s3 = inlined_call_operand.hbm [shape: f32[8,512], index: 3, kind: output, shape index: {}]
  %s4 = sld [smem:[#allocation0]]
  $region34: #{tpu_custom_call.1} parent=0
    _
  %s6 = ssub.s32 1, %s4
  %s7 = scalar_select 0, %s6, %s4
  $region1: #{tpu_custom_call.1} parent=0
    #allocation2 [shape = 'u8[4096]{0}', space=vmem, size = 0x1000, scoped, tag = 'input window, operand 0, single buffered']
    #allocation3 [shape = 's32[1]{0}', space=sflag, size = 0x4, scoped, tag = 'scoped memory for tpu_custom_call.1']
    #allocation4 [shape = 's32[1]{0}', space=sflag, size = 0x4, scoped, tag = 'scoped memory for tpu_custom_call.1']
    #allocation5 [shape = 'u8[131072]{0}', space=vmem, size = 0x20000, scoped, tag = 'input window, operand 1, single buffered']
    #allocation6 [shape = 's32[1]{0}', space=sflag, size = 0x4, scoped, tag = 'scoped memory for tpu_custom_call.1']
    #allocation7 [shape = 'u8[32768]{0}', space=vmem, size = 0x8000, scoped, tag = 'input window, operand 2, single buffered']
    #allocation8 [shape = 'u8[16384]{0}', space=vmem, size = 0x4000, scoped, tag = 'output window, operand 0, single buffered']
    %8 = vsyncpa [#allocation3], 0
    %9 = vsyncpa [#allocation6], 0
    %10 = vsyncpa [#allocation4], 0
    // Predicated region
    $region2: #{tpu_custom_call.1} parent=1 // pred_check
      _
    $region3: #{tpu_custom_call.1} parent=1 // pred_check_branch
      %12 = sbr.rel (0) target = $region5
    $region4: #{tpu_custom_call.1} parent=1 // pred_region
      %s14 = ssub.s32 128, 128
      %15 = vsyncadd [#allocation3], %s14
      %s17 = sshll.u32 [#allocation2], 4
      %s18 = int_to_ptr.vmem [resolvable:$true] %s17
      %20 = dma.hbm_to_vmem [thread:$0]  %s0, 128, %s18, [#allocation3]
    $region5: #{tpu_custom_call.1} parent=1 // pred_fallthru
      _
    // Predicated region
    $region6: #{tpu_custom_call.1} parent=1 // pred_check
      _
    $region7: #{tpu_custom_call.1} parent=1 // pred_check_branch
      %22 = sbr.rel (0) target = $region9
    $region8: #{tpu_custom_call.1} parent=1 // pred_region
      %s24 = ssub.s32 4096, 4096
      %25 = vsyncadd [#allocation6], %s24
      %s26 = sshll.u32 [#allocation5], 4
      %s27 = int_to_ptr.vmem [resolvable:$true] %s26
      %32 = dma.hbm_to_vmem [thread:$0]  %s1, 4096, %s27, [#allocation6], 256, 256, 16
    $region9: #{tpu_custom_call.1} parent=1 // pred_fallthru
      _
    // Predicated region
    $region10: #{tpu_custom_call.1} parent=1 // pred_check
      _
    $region11: #{tpu_custom_call.1} parent=1 // pred_check_branch
      %34 = sbr.rel (0) target = $region13
    $region12: #{tpu_custom_call.1} parent=1 // pred_region
      %s36 = ssub.s32 1024, 1024
      %37 = vsyncadd [#allocation6], %s36
      %s38 = sshll.u32 [#allocation7], 4
      %s39 = int_to_ptr.vmem [resolvable:$true] %s38
      %44 = dma.hbm_to_vmem [thread:$0]  %s2, 1024, %s39, [#allocation6], 512, 512, 32
    $region13: #{tpu_custom_call.1} parent=1 // pred_fallthru
      _
    // Predicated region
    $region14: #{tpu_custom_call.1} parent=1 // pred_check
      _
    $region15: #{tpu_custom_call.1} parent=1 // pred_check_branch
      %46 = sbr.rel (0) target = $region17
    $region16: #{tpu_custom_call.1} parent=1 // pred_region
      %47 = dma.done [#allocation3], 128
    $region17: #{tpu_custom_call.1} parent=1 // pred_fallthru
      _
    // Predicated region
    $region18: #{tpu_custom_call.1} parent=1 // pred_check
      _
    $region19: #{tpu_custom_call.1} parent=1 // pred_check_branch
      %49 = sbr.rel (0) target = $region21
    $region20: #{tpu_custom_call.1} parent=1 // pred_region
      %50 = dma.done [#allocation6], 4096
    $region21: #{tpu_custom_call.1} parent=1 // pred_fallthru
      _
    // Predicated region
    $region22: #{tpu_custom_call.1} parent=1 // pred_check
      _
    $region23: #{tpu_custom_call.1} parent=1 // pred_check_branch
      %52 = sbr.rel (0) target = $region25
    $region24: #{tpu_custom_call.1} parent=1 // pred_region
      %53 = dma.done [#allocation6], 1024
    $region25: #{tpu_custom_call.1} parent=1 // pred_fallthru
      _
    %v55 = vld [vmem:[#allocation2] sm:$0xff]
    %vm56 = vcmp.gt.s32.totalorder %v55, 4294967295
    %v57 = vsel %vm56, %v55, 4294967295
    %vm58 = vcmp.lt.s32.totalorder %v57, 8
    %v59 = vsel %vm58, %v57, 8
    %v60 = vadd.s32 %v59, 1
    %v61 = vcvt.s32.f32 %v60
    %v62 = vpack.c.bf16 %v61, %v61
    %v63 = vld [vmem:[#allocation5] sm:$0xff]
    %v64 = vld [vmem:[#allocation5 + $0x8] sm:$0xff]
    %v65 = vld [vmem:[#allocation5 + $0x10] sm:$0xff]
    %v66 = vld [vmem:[#allocation5 + $0x18] sm:$0xff]
    %v67 = vld [vmem:[#allocation5 + $0x20] sm:$0xff]
    %v68 = vld [vmem:[#allocation5 + $0x28] sm:$0xff]
    %v69 = vld [vmem:[#allocation5 + $0x30] sm:$0xff]
    %v70 = vld [vmem:[#allocation5 + $0x38] sm:$0xff]
    %v71 = vld [vmem:[#allocation5 + $0x40] sm:$0xff]
    %v72 = vld [vmem:[#allocation5 + $0x48] sm:$0xff]
    %v73 = vld [vmem:[#allocation5 + $0x50] sm:$0xff]
    %v74 = vld [vmem:[#allocation5 + $0x58] sm:$0xff]
    %v75 = vld [vmem:[#allocation5 + $0x60] sm:$0xff]
    %v76 = vld [vmem:[#allocation5 + $0x68] sm:$0xff]
    %v77 = vld [vmem:[#allocation5 + $0x70] sm:$0xff]
    %v78 = vld [vmem:[#allocation5 + $0x78] sm:$0xff]
    %v79 = vld [vmem:[#allocation5 + $0x80] sm:$0xff]
    %v80 = vld [vmem:[#allocation5 + $0x88] sm:$0xff]
    %v81 = vld [vmem:[#allocation5 + $0x90] sm:$0xff]
    %v82 = vld [vmem:[#allocation5 + $0x98] sm:$0xff]
    %v83 = vld [vmem:[#allocation5 + $0xa0] sm:$0xff]
    %v84 = vld [vmem:[#allocation5 + $0xa8] sm:$0xff]
    %v85 = vld [vmem:[#allocation5 + $0xb0] sm:$0xff]
    %v86 = vld [vmem:[#allocation5 + $0xb8] sm:$0xff]
    %v87 = vld [vmem:[#allocation5 + $0xc0] sm:$0xff]
    %v88 = vld [vmem:[#allocation5 + $0xc8] sm:$0xff]
    %v89 = vld [vmem:[#allocation5 + $0xd0] sm:$0xff]
    %v90 = vld [vmem:[#allocation5 + $0xd8] sm:$0xff]
    %v91 = vld [vmem:[#allocation5 + $0xe0] sm:$0xff]
    %v92 = vld [vmem:[#allocation5 + $0xe8] sm:$0xff]
    %v93 = vld [vmem:[#allocation5 + $0xf0] sm:$0xff]
    %v94 = vld [vmem:[#allocation5 + $0xf8] sm:$0xff]
    %v127 = vunpack.c.l.b16 %v63
    %v128 = vunpack.c.h.b16 %v63
    %v129 = vunpack.c.l.b16 %v64
    %v130 = vunpack.c.h.b16 %v64
    %v131 = vunpack.c.l.b16 %v65
    %v132 = vunpack.c.h.b16 %v65
    %v133 = vunpack.c.l.b16 %v66
    %v134 = vunpack.c.h.b16 %v66
    %v135 = vunpack.c.l.b16 %v67
    %v136 = vunpack.c.h.b16 %v67
    %v137 = vunpack.c.l.b16 %v68
    %v138 = vunpack.c.h.b16 %v68
    %v139 = vunpack.c.l.b16 %v69
    %v140 = vunpack.c.h.b16 %v69
    %v141 = vunpack.c.l.b16 %v70
    %v142 = vunpack.c.h.b16 %v70
    %v143 = vunpack.c.l.b16 %v71
    %v144 = vunpack.c.h.b16 %v71
    %v145 = vunpack.c.l.b16 %v72
    %v146 = vunpack.c.h.b16 %v72
    %v147 = vunpack.c.l.b16 %v73
    %v148 = vunpack.c.h.b16 %v73
    %v149 = vunpack.c.l.b16 %v74
    %v150 = vunpack.c.h.b16 %v74
    %v151 = vunpack.c.l.b16 %v75
    %v152 = vunpack.c.h.b16 %v75
    %v153 = vunpack.c.l.b16 %v76
    %v154 = vunpack.c.h.b16 %v76
    %v155 = vunpack.c.l.b16 %v77
    %v156 = vunpack.c.h.b16 %v77
    %v157 = vunpack.c.l.b16 %v78
    %v158 = vunpack.c.h.b16 %v78
    %v159 = vunpack.c.l.b16 %v79
    %v160 = vunpack.c.h.b16 %v79
    %v161 = vunpack.c.l.b16 %v80
    %v162 = vunpack.c.h.b16 %v80
    %v163 = vunpack.c.l.b16 %v81
    %v164 = vunpack.c.h.b16 %v81
    %v165 = vunpack.c.l.b16 %v82
    %v166 = vunpack.c.h.b16 %v82
    %v167 = vunpack.c.l.b16 %v83
    %v168 = vunpack.c.h.b16 %v83
    %v169 = vunpack.c.l.b16 %v84
    %v170 = vunpack.c.h.b16 %v84
    %v171 = vunpack.c.l.b16 %v85
    %v172 = vunpack.c.h.b16 %v85
    %v173 = vunpack.c.l.b16 %v86
    %v174 = vunpack.c.h.b16 %v86
    %v175 = vunpack.c.l.b16 %v87
    %v176 = vunpack.c.h.b16 %v87
    %v177 = vunpack.c.l.b16 %v88
    %v178 = vunpack.c.h.b16 %v88
    %v179 = vunpack.c.l.b16 %v89
    %v180 = vunpack.c.h.b16 %v89
    %v181 = vunpack.c.l.b16 %v90
    %v182 = vunpack.c.h.b16 %v90
    %v183 = vunpack.c.l.b16 %v91
    %v184 = vunpack.c.h.b16 %v91
    %v185 = vunpack.c.l.b16 %v92
    %v186 = vunpack.c.h.b16 %v92
    %v187 = vunpack.c.l.b16 %v93
    %v188 = vunpack.c.h.b16 %v93
    %v189 = vunpack.c.l.b16 %v94
    %v190 = vunpack.c.h.b16 %v94
    %v191 = vpack.c.b16 %v131, %v127
    %v192 = vpack.c.b16 %v132, %v128
    %v193 = vpack.c.b16 %v133, %v129
    %v194 = vpack.c.b16 %v134, %v130
    %v195 = vpack.c.b16 %v139, %v135
    %v196 = vpack.c.b16 %v140, %v136
    %v197 = vpack.c.b16 %v141, %v137
    %v198 = vpack.c.b16 %v142, %v138
    %v199 = vpack.c.b16 %v147, %v143
    %v200 = vpack.c.b16 %v148, %v144
    %v201 = vpack.c.b16 %v149, %v145
    %v202 = vpack.c.b16 %v150, %v146
    %v203 = vpack.c.b16 %v155, %v151
    %v204 = vpack.c.b16 %v156, %v152
    %v205 = vpack.c.b16 %v157, %v153
    %v206 = vpack.c.b16 %v158, %v154
    %v207 = vpack.c.b16 %v163, %v159
    %v208 = vpack.c.b16 %v164, %v160
    %v209 = vpack.c.b16 %v165, %v161
    %v210 = vpack.c.b16 %v166, %v162
    %v211 = vpack.c.b16 %v171, %v167
    %v212 = vpack.c.b16 %v172, %v168
    %v213 = vpack.c.b16 %v173, %v169
    %v214 = vpack.c.b16 %v174, %v170
    %v215 = vpack.c.b16 %v179, %v175
    %v216 = vpack.c.b16 %v180, %v176
    %v217 = vpack.c.b16 %v181, %v177
    %v218 = vpack.c.b16 %v182, %v178
    %v219 = vpack.c.b16 %v187, %v183
    %v220 = vpack.c.b16 %v188, %v184
    %v221 = vpack.c.b16 %v189, %v185
    %v222 = vpack.c.b16 %v190, %v186
    %255 = vmatprep.subr.bf16.mxu0 %v192
    %256 = vmatpush1.bf16.msra.mxu0 %v191
    %257 = vmatprep.subr.bf16.mxu0 %v196
    %258 = vmatpush1.bf16.msra.mxu0 %v195
    %259 = vmatprep.subr.bf16.mxu0 %v200
    %260 = vmatpush1.bf16.msra.mxu0 %v199
    %261 = vmatprep.subr.bf16.mxu0 %v204
    %262 = vmatpush1.bf16.msra.mxu0 %v203
    %263 = vmatprep.subr.bf16.mxu0 %v208
    %264 = vmatpush1.bf16.msra.mxu0 %v207
    %265 = vmatprep.subr.bf16.mxu0 %v212
    %266 = vmatpush1.bf16.msra.mxu0 %v211
    %267 = vmatprep.subr.bf16.mxu0 %v216
    %268 = vmatpush1.bf16.msra.mxu0 %v215
    %269 = vmatprep.subr.bf16.mxu0 %v220
    %270 = vmatpush1.bf16.msra.mxu0 %v219
    %271 = vmatprep.subr.bf16.mxu0 0
    %272 = vmatpush1.bf16.msra.mxu0 0
    %273 = vmatprep.subr.bf16.mxu0 0
    %274 = vmatpush1.bf16.msra.mxu0 0
    %275 = vmatprep.subr.bf16.mxu0 0
    %276 = vmatpush1.bf16.msra.mxu0 0
    %277 = vmatprep.subr.bf16.mxu0 0
    %278 = vmatpush1.bf16.msra.mxu0 0
    %279 = vmatprep.subr.bf16.mxu0 0
    %280 = vmatpush1.bf16.msra.mxu0 0
    %281 = vmatprep.subr.bf16.mxu0 0
    %282 = vmatpush1.bf16.msra.mxu0 0
    %283 = vmatprep.subr.bf16.mxu0 0
    %284 = vmatpush1.bf16.msra.mxu0 0
    %285 = vmatprep.subr.bf16.mxu0 0
    %286 = vmatpush1.bf16.msra.mxu0 0
    %287 = vmatprep.mubr.bf16.mxu0 0
    %288 = vmatmul.mubr.bf16.gmra.mrb[0].mxu0 %v62
    %v289 = vpop.f32.mrb[0].mxu0
    %v290 = vadd.f32 0.0, %v289
    %v291 = vpop.f32.mrb[0].mxu0
    %v292 = vadd.f32 0.0, %v291
    %v293 = vpop.f32.mrb[0].mxu0
    %v294 = vpop.f32.mrb[0].mxu0
    %295 = vdwg.mxu0
    %296 = vmatprep.subr.bf16.mxu0 %v194
    %297 = vmatpush1.bf16.msra.mxu0 %v193
    %298 = vmatprep.subr.bf16.mxu0 %v198
    %299 = vmatpush1.bf16.msra.mxu0 %v197
    %300 = vmatprep.subr.bf16.mxu0 %v202
    %301 = vmatpush1.bf16.msra.mxu0 %v201
    %302 = vmatprep.subr.bf16.mxu0 %v206
    %303 = vmatpush1.bf16.msra.mxu0 %v205
    %304 = vmatprep.subr.bf16.mxu0 %v210
    %305 = vmatpush1.bf16.msra.mxu0 %v209
    %306 = vmatprep.subr.bf16.mxu0 %v214
    %307 = vmatpush1.bf16.msra.mxu0 %v213
    %308 = vmatprep.subr.bf16.mxu0 %v218
    %309 = vmatpush1.bf16.msra.mxu0 %v217
    %310 = vmatprep.subr.bf16.mxu0 %v222
    %311 = vmatpush1.bf16.msra.mxu0 %v221
    %312 = vmatprep.subr.bf16.mxu0 0
    %313 = vmatpush1.bf16.msra.mxu0 0
    %314 = vmatprep.subr.bf16.mxu0 0
    %315 = vmatpush1.bf16.msra.mxu0 0
    %316 = vmatprep.subr.bf16.mxu0 0
    %317 = vmatpush1.bf16.msra.mxu0 0
    %318 = vmatprep.subr.bf16.mxu0 0
    %319 = vmatpush1.bf16.msra.mxu0 0
    %320 = vmatprep.subr.bf16.mxu0 0
    %321 = vmatpush1.bf16.msra.mxu0 0
    %322 = vmatprep.subr.bf16.mxu0 0
    %323 = vmatpush1.bf16.msra.mxu0 0
    %324 = vmatprep.subr.bf16.mxu0 0
    %325 = vmatpush1.bf16.msra.mxu0 0
    %326 = vmatprep.subr.bf16.mxu0 0
    %327 = vmatpush1.bf16.msra.mxu0 0
    %328 = vmatprep.mubr.bf16.mxu0 0
    %329 = vmatmul.mubr.bf16.gmra.mrb[0].mxu0 %v62
    %v330 = vpop.f32.mrb[0].mxu0
    %v331 = vadd.f32 0.0, %v330
    %v332 = vpop.f32.mrb[0].mxu0
    %v333 = vadd.f32 0.0, %v332
    %v334 = vpop.f32.mrb[0].mxu0
    %v335 = vpop.f32.mrb[0].mxu0
    %336 = vdwg.mxu0
    %v337 = vld [vmem:[#allocation7] ss:$8 sm:$0xf]
    %v339 = vlaneseq
    %v340 = vshrl.u32 %v339, 7
    %v341 = vsub.s32 0, %v340
    %v342 = vrot.slane %v337, %v341
    %v343 = vlaneseq
    %v344 = vshrl.u32 %v343, 7
    %v345 = vsub.s32 1, %v344
    %v346 = vrot.slane %v337, %v345
    %v347 = vlaneseq
    %v348 = vshrl.u32 %v347, 7
    %v349 = vsub.s32 2, %v348
    %v350 = vrot.slane %v337, %v349
    %v351 = vlaneseq
    %v352 = vshrl.u32 %v351, 7
    %v353 = vsub.s32 3, %v352
    %v354 = vrot.slane %v337, %v353
    %s359 = scalar_lea.vmem [#allocation7], 1
    %v360 = vld [vmem:[%s359] ss:$8 sm:$0xf]
    %vm361 = vcmp.eq.f32.partialorder %v290, 1.0
    %vm362 = vcmp.eq.f32.partialorder %v292, 1.0
    %vm363 = vcmp.eq.f32.partialorder %v331, 1.0
    %vm364 = vcmp.eq.f32.partialorder %v333, 1.0
    %v366 = vlaneseq
    %v367 = vshrl.u32 %v366, 7
    %v368 = vsub.s32 0, %v367
    %v369 = vrot.slane %v360, %v368
    %v370 = vlaneseq
    %v371 = vshrl.u32 %v370, 7
    %v372 = vsub.s32 1, %v371
    %v373 = vrot.slane %v360, %v372
    %v374 = vlaneseq
    %v375 = vshrl.u32 %v374, 7
    %v376 = vsub.s32 2, %v375
    %v377 = vrot.slane %v360, %v376
    %v378 = vlaneseq
    %v379 = vshrl.u32 %v378, 7
    %v380 = vsub.s32 3, %v379
    %v381 = vrot.slane %v360, %v380
    %v386 = vsel %vm361, %v369, %v342
    %v387 = vsel %vm362, %v373, %v346
    %v388 = vsel %vm363, %v377, %v350
    %v389 = vsel %vm364, %v381, %v354
    %s390 = scalar_lea.vmem [#allocation7], 2
    %v391 = vld [vmem:[%s390] ss:$8 sm:$0xf]
    %vm392 = vcmp.eq.f32.partialorder %v290, 2.0
    %vm393 = vcmp.eq.f32.partialorder %v292, 2.0
    %vm394 = vcmp.eq.f32.partialorder %v331, 2.0
    %vm395 = vcmp.eq.f32.partialorder %v333, 2.0
    %v397 = vlaneseq
    %v398 = vshrl.u32 %v397, 7
    %v399 = vsub.s32 0, %v398
    %v400 = vrot.slane %v391, %v399
    %v401 = vlaneseq
    %v402 = vshrl.u32 %v401, 7
    %v403 = vsub.s32 1, %v402
    %v404 = vrot.slane %v391, %v403
    %v405 = vlaneseq
    %v406 = vshrl.u32 %v405, 7
    %v407 = vsub.s32 2, %v406
    %v408 = vrot.slane %v391, %v407
    %v409 = vlaneseq
    %v410 = vshrl.u32 %v409, 7
    %v411 = vsub.s32 3, %v410
    %v412 = vrot.slane %v391, %v411
    %v417 = vsel %vm392, %v400, %v386
    %v418 = vsel %vm393, %v404, %v387
    %v419 = vsel %vm394, %v408, %v388
    %v420 = vsel %vm395, %v412, %v389
    %s421 = scalar_lea.vmem [#allocation7], 3
    %v422 = vld [vmem:[%s421] ss:$8 sm:$0xf]
    %vm423 = vcmp.eq.f32.partialorder %v290, 3.0
    %vm424 = vcmp.eq.f32.partialorder %v292, 3.0
    %vm425 = vcmp.eq.f32.partialorder %v331, 3.0
    %vm426 = vcmp.eq.f32.partialorder %v333, 3.0
    %v428 = vlaneseq
    %v429 = vshrl.u32 %v428, 7
    %v430 = vsub.s32 0, %v429
    %v431 = vrot.slane %v422, %v430
    %v432 = vlaneseq
    %v433 = vshrl.u32 %v432, 7
    %v434 = vsub.s32 1, %v433
    %v435 = vrot.slane %v422, %v434
    %v436 = vlaneseq
    %v437 = vshrl.u32 %v436, 7
    %v438 = vsub.s32 2, %v437
    %v439 = vrot.slane %v422, %v438
    %v440 = vlaneseq
    %v441 = vshrl.u32 %v440, 7
    %v442 = vsub.s32 3, %v441
    %v443 = vrot.slane %v422, %v442
    %v448 = vsel %vm423, %v431, %v417
    %v449 = vsel %vm424, %v435, %v418
    %v450 = vsel %vm425, %v439, %v419
    %v451 = vsel %vm426, %v443, %v420
    %s452 = scalar_lea.vmem [#allocation7], 4
    %v453 = vld [vmem:[%s452] ss:$8 sm:$0xf]
    %vm454 = vcmp.eq.f32.partialorder %v290, 4.0
    %vm455 = vcmp.eq.f32.partialorder %v292, 4.0
    %vm456 = vcmp.eq.f32.partialorder %v331, 4.0
    %vm457 = vcmp.eq.f32.partialorder %v333, 4.0
    %v459 = vlaneseq
    %v460 = vshrl.u32 %v459, 7
    %v461 = vsub.s32 0, %v460
    %v462 = vrot.slane %v453, %v461
    %v463 = vlaneseq
    %v464 = vshrl.u32 %v463, 7
    %v465 = vsub.s32 1, %v464
    %v466 = vrot.slane %v453, %v465
    %v467 = vlaneseq
    %v468 = vshrl.u32 %v467, 7
    %v469 = vsub.s32 2, %v468
    %v470 = vrot.slane %v453, %v469
    %v471 = vlaneseq
    %v472 = vshrl.u32 %v471, 7
    %v473 = vsub.s32 3, %v472
    %v474 = vrot.slane %v453, %v473
    %v479 = vsel %vm454, %v462, %v448
    %v480 = vsel %vm455, %v466, %v449
    %v481 = vsel %vm456, %v470, %v450
    %v482 = vsel %vm457, %v474, %v451
    %s483 = scalar_lea.vmem [#allocation7], 5
    %v484 = vld [vmem:[%s483] ss:$8 sm:$0xf]
    %vm485 = vcmp.eq.f32.partialorder %v290, 5.0
    %vm486 = vcmp.eq.f32.partialorder %v292, 5.0
    %vm487 = vcmp.eq.f32.partialorder %v331, 5.0
    %vm488 = vcmp.eq.f32.partialorder %v333, 5.0
    %v490 = vlaneseq
    %v491 = vshrl.u32 %v490, 7
    %v492 = vsub.s32 0, %v491
    %v493 = vrot.slane %v484, %v492
    %v494 = vlaneseq
    %v495 = vshrl.u32 %v494, 7
    %v496 = vsub.s32 1, %v495
    %v497 = vrot.slane %v484, %v496
    %v498 = vlaneseq
    %v499 = vshrl.u32 %v498, 7
    %v500 = vsub.s32 2, %v499
    %v501 = vrot.slane %v484, %v500
    %v502 = vlaneseq
    %v503 = vshrl.u32 %v502, 7
    %v504 = vsub.s32 3, %v503
    %v505 = vrot.slane %v484, %v504
    %v510 = vsel %vm485, %v493, %v479
    %v511 = vsel %vm486, %v497, %v480
    %v512 = vsel %vm487, %v501, %v481
    %v513 = vsel %vm488, %v505, %v482
    %s514 = scalar_lea.vmem [#allocation7], 6
    %v515 = vld [vmem:[%s514] ss:$8 sm:$0xf]
    %vm516 = vcmp.eq.f32.partialorder %v290, 6.0
    %vm517 = vcmp.eq.f32.partialorder %v292, 6.0
    %vm518 = vcmp.eq.f32.partialorder %v331, 6.0
    %vm519 = vcmp.eq.f32.partialorder %v333, 6.0
    %v521 = vlaneseq
    %v522 = vshrl.u32 %v521, 7
    %v523 = vsub.s32 0, %v522
    %v524 = vrot.slane %v515, %v523
    %v525 = vlaneseq
    %v526 = vshrl.u32 %v525, 7
    %v527 = vsub.s32 1, %v526
    %v528 = vrot.slane %v515, %v527
    %v529 = vlaneseq
    %v530 = vshrl.u32 %v529, 7
    %v531 = vsub.s32 2, %v530
    %v532 = vrot.slane %v515, %v531
    %v533 = vlaneseq
    %v534 = vshrl.u32 %v533, 7
    %v535 = vsub.s32 3, %v534
    %v536 = vrot.slane %v515, %v535
    %v541 = vsel %vm516, %v524, %v510
    %v542 = vsel %vm517, %v528, %v511
    %v543 = vsel %vm518, %v532, %v512
    %v544 = vsel %vm519, %v536, %v513
    %s545 = scalar_lea.vmem [#allocation7], 7
    %v546 = vld [vmem:[%s545] ss:$8 sm:$0xf]
    %vm547 = vcmp.eq.f32.partialorder %v290, 7.0
    %vm548 = vcmp.eq.f32.partialorder %v292, 7.0
    %vm549 = vcmp.eq.f32.partialorder %v331, 7.0
    %vm550 = vcmp.eq.f32.partialorder %v333, 7.0
    %v552 = vlaneseq
    %v553 = vshrl.u32 %v552, 7
    %v554 = vsub.s32 0, %v553
    %v555 = vrot.slane %v546, %v554
    %v556 = vlaneseq
    %v557 = vshrl.u32 %v556, 7
    %v558 = vsub.s32 1, %v557
    %v559 = vrot.slane %v546, %v558
    %v560 = vlaneseq
    %v561 = vshrl.u32 %v560, 7
    %v562 = vsub.s32 2, %v561
    %v563 = vrot.slane %v546, %v562
    %v564 = vlaneseq
    %v565 = vshrl.u32 %v564, 7
    %v566 = vsub.s32 3, %v565
    %v567 = vrot.slane %v546, %v566
    %v572 = vsel %vm547, %v555, %v541
    %v573 = vsel %vm548, %v559, %v542
    %v574 = vsel %vm549, %v563, %v543
    %v575 = vsel %vm550, %v567, %v544
    %s576 = scalar_lea.vmem [#allocation7], 32
    %v577 = vld [vmem:[%s576] ss:$8 sm:$0xf]
    %vm578 = vcmp.eq.f32.partialorder %v290, 8.0
    %vm579 = vcmp.eq.f32.partialorder %v292, 8.0
    %vm580 = vcmp.eq.f32.partialorder %v331, 8.0
    %vm581 = vcmp.eq.f32.partialorder %v333, 8.0
    %v583 = vlaneseq
    %v584 = vshrl.u32 %v583, 7
    %v585 = vsub.s32 0, %v584
    %v586 = vrot.slane %v577, %v585
    %v587 = vlaneseq
    %v588 = vshrl.u32 %v587, 7
    %v589 = vsub.s32 1, %v588
    %v590 = vrot.slane %v577, %v589
    %v591 = vlaneseq
    %v592 = vshrl.u32 %v591, 7
    %v593 = vsub.s32 2, %v592
    %v594 = vrot.slane %v577, %v593
    %v595 = vlaneseq
    %v596 = vshrl.u32 %v595, 7
    %v597 = vsub.s32 3, %v596
    %v598 = vrot.slane %v577, %v597
    %v603 = vsel %vm578, %v586, %v572
    %v604 = vsel %vm579, %v590, %v573
    %v605 = vsel %vm580, %v594, %v574
    %v606 = vsel %vm581, %v598, %v575
    %s607 = scalar_lea.vmem [#allocation7], 33
    %v608 = vld [vmem:[%s607] ss:$8 sm:$0xf]
    %vm609 = vcmp.eq.f32.partialorder %v290, 9.0
    %vm610 = vcmp.eq.f32.partialorder %v292, 9.0
    %vm611 = vcmp.eq.f32.partialorder %v331, 9.0
    %vm612 = vcmp.eq.f32.partialorder %v333, 9.0
    %v614 = vlaneseq
    %v615 = vshrl.u32 %v614, 7
    %v616 = vsub.s32 0, %v615
    %v617 = vrot.slane %v608, %v616
    %v618 = vlaneseq
    %v619 = vshrl.u32 %v618, 7
    %v620 = vsub.s32 1, %v619
    %v621 = vrot.slane %v608, %v620
    %v622 = vlaneseq
    %v623 = vshrl.u32 %v622, 7
    %v624 = vsub.s32 2, %v623
    %v625 = vrot.slane %v608, %v624
    %v626 = vlaneseq
    %v627 = vshrl.u32 %v626, 7
    %v628 = vsub.s32 3, %v627
    %v629 = vrot.slane %v608, %v628
    %v634 = vsel %vm609, %v617, %v603
    %v635 = vsel %vm610, %v621, %v604
    %v636 = vsel %vm611, %v625, %v605
    %v637 = vsel %vm612, %v629, %v606
    %638 = vst [vmem:[#allocation8] sm:$0xff] %v634
    %639 = vst [vmem:[#allocation8 + $0x8] sm:$0xff] %v635
    %640 = vst [vmem:[#allocation8 + $0x10] sm:$0xff] %v636
    %641 = vst [vmem:[#allocation8 + $0x18] sm:$0xff] %v637
    // Predicated region
    $region26: #{tpu_custom_call.1} parent=1 // pred_check
      _
    $region27: #{tpu_custom_call.1} parent=1 // pred_check_branch
      %643 = sbr.rel (0) target = $region29
    $region28: #{tpu_custom_call.1} parent=1 // pred_region
      %s645 = ssub.s32 512, 512
      %646 = vsyncadd [#allocation4], %s645
      %s648 = sshll.u32 [#allocation8], 4
      %s649 = int_to_ptr.vmem [resolvable:$true] %s648
      %651 = dma.vmem_to_hbm [thread:$0]  %s649, 512, %s3, [#allocation4]
    $region29: #{tpu_custom_call.1} parent=1 // pred_fallthru
      _
    // Predicated region
    $region30: #{tpu_custom_call.1} parent=1 // pred_check
      _
    $region31: #{tpu_custom_call.1} parent=1 // pred_check_branch
      %653 = sbr.rel (0) target = $region33
    $region32: #{tpu_custom_call.1} parent=1 // pred_region
      %654 = dma.done [#allocation4], 512
    $region33: #{tpu_custom_call.1} parent=1 // pred_fallthru
      _
    %655 = vsyncpa [#allocation3], 1
    %656 = vsyncpa [#allocation6], 1
    %657 = vsyncpa [#allocation4], 1

</llo_original>
